<compile_context>
chip_gen: v7x
topology: tpu7x:2x2x1
jax: 0.10.0
libtpu: 0.0.40
codegen_flags: <defaults>
</compile_context>

<pallas_src>
import jax
import jax.numpy as jnp
from jax.experimental import pallas as pl
from jax.experimental.pallas import tpu as pltpu

_H = 128        # hidden dim padded 100 -> 128
_MAX_TM = 4096  # max batch tile (lane axis), multiple of 128


def _round_up(n, m):
    return -(-n // m) * m


def _mlp_kernel(x_ref, w2_ref, s_ref, o_ref):
    # x_ref : (2, TM)  f32       w2_ref : (H, H)  bf16
    # s_ref : (H, 8)   f32 packed small params    o_ref : (1, TM) f32
    #   s[:,0]=w1[:,0]  s[:,1]=w1[:,1]  s[:,2]=b1  s[:,3]=b2  s[:,4]=w3  s[:,5]=b3
    x = x_ref[...]
    s = s_ref[...]
    w1c0 = s[:, 0:1]
    w1c1 = s[:, 1:2]
    b1 = s[:, 2:3]
    b2 = s[:, 3:4]
    w3 = s[:, 4:5]
    b3 = s[0:1, 5:6]

    # Layer 1 (K=2): VPU broadcast-FMAs instead of a degenerate MXU pass.
    h1 = w1c0 * x[0:1, :] + w1c1 * x[1:2, :] + b1
    h1 = jnp.maximum(h1, 0.0)                                   # (H, TM) f32

    # Layer 2 (128x128xTM): the one matmul on the MXU.  Explicit bf16 operands
    # with f32 accumulation -> native single-pass MXU, no precision ambiguity.
    h2 = jnp.dot(w2_ref[...], h1.astype(jnp.bfloat16),
                 preferred_element_type=jnp.float32)            # (H, TM) f32
    h2 = jnp.maximum(h2 + b2, 0.0)

    # Layer 3 (N=1): multiply + sublane reduce (XLU) instead of an MXU matvec.
    out = jnp.sum(w3 * h2, axis=0, keepdims=True) + b3
    o_ref[...] = out.astype(o_ref.dtype)                        # (1, TM)


def _pack_params(params):
    """PyTorch-convention (out,in) params -> padded, kernel-friendly buffers."""
    w1, b1 = params["w1"], params["b1"]    # (100, 2), (100,)
    w2, b2 = params["w2"], params["b2"]    # (100, 100), (100,)
    w3, b3 = params["w3"], params["b3"]    # (1, 100), (1,)
    h = w1.shape[0]
    f32 = jnp.float32

    small = jnp.zeros((_H, 8), f32)
    small = small.at[:h, 0].set(w1[:, 0].astype(f32))
    small = small.at[:h, 1].set(w1[:, 1].astype(f32))
    small = small.at[:h, 2].set(b1.astype(f32))
    small = small.at[:h, 3].set(b2.astype(f32))
    small = small.at[:h, 4].set(w3[0].astype(f32))
    small = small.at[:, 5].set(b3[0].astype(f32))

    # bf16 weight for the MXU; zero padding stays exactly zero in bf16.
    w2p = jnp.zeros((_H, _H), jnp.bfloat16).at[:h, :h].set(w2.astype(jnp.bfloat16))
    return w2p, small


def _choose_tiling(B):
    """Pick (tm, bp, n_tiles): minimal 128-padding, >=2 grid steps for B>=256."""
    bp128 = _round_up(B, 128)
    n_tiles = max(-(-bp128 // _MAX_TM), 2 if bp128 >= 256 else 1)
    tm = _round_up(-(-bp128 // n_tiles), 128)
    bp = n_tiles * tm
    return tm, bp, n_tiles


@jax.jit
def dynamics_nlp_forward(x, params):
    """x: (B, 2) float32; params in PyTorch (out, in) convention -> (B, 1)."""
    B = x.shape[0]
    tm, bp, n_tiles = _choose_tiling(B)

    # Feature-major, zero-padded batch (padded columns are discarded below).
    x_t = jnp.zeros((2, bp), jnp.float32).at[:, :B].set(x.astype(jnp.float32).T)
    w2p, small = _pack_params(params)

    flops = 2 * bp * (2 * _H + _H * _H + _H)
    bytes_accessed = 4 * (2 * bp + bp + _H * 8) + 2 * _H * _H

    out_t = pl.pallas_call(
        _mlp_kernel,
        out_shape=jax.ShapeDtypeStruct((1, bp), jnp.float32),
        grid=(n_tiles,),
        in_specs=[
            pl.BlockSpec((2, tm), lambda i: (0, i)),     # x tile (lane-dense)
            pl.BlockSpec((_H, _H), lambda i: (0, 0)),    # w2 (resident, bf16)
            pl.BlockSpec((_H, 8), lambda i: (0, 0)),     # packed small params
        ],
        out_specs=pl.BlockSpec((1, tm), lambda i: (0, i)),   # lane-dense output
        compiler_params=pltpu.CompilerParams(
            dimension_semantics=("parallel",),
            vmem_limit_bytes=32 * 1024 * 1024,
        ),
        cost_estimate=pl.CostEstimate(
            flops=flops, transcendentals=0, bytes_accessed=bytes_accessed),
    )(x_t, w2p, small)

    return out_t[0, :B].reshape(B, 1)


def init_params(key):
    """PyTorch-default Linear init (uniform +-1/sqrt(fan_in)), (out, in) layout."""
    def linear(key, fan_in, fan_out):
        kw, kb = jax.random.split(key)
        bound = 1.0 / jnp.sqrt(float(fan_in))
        w = jax.random.uniform(kw, (fan_out, fan_in), jnp.float32, -bound, bound)
        b = jax.random.uniform(kb, (fan_out,), jnp.float32, -bound, bound)
        return w, b

    k1, k2, k3 = jax.random.split(key, 3)
    w1, b1 = linear(k1, 2, 100)
    w2, b2 = linear(k2, 100, 100)
    w3, b3 = linear(k3, 100, 1)
    return {"w1": w1, "b1": b1, "w2": w2, "b2": b2, "w3": w3, "b3": b3}


def _reference(x, params, bf16_layer2=False):
    """Plain-JAX reference (same math as the PyTorch module: y = x @ W^T + b)."""
    h1 = jnp.maximum(x @ params["w1"].T + params["b1"], 0.0)
    if bf16_layer2:
        # Matches the kernel's bf16-operand / f32-accumulate layer 2.
        h2 = jnp.dot(h1.astype(jnp.bfloat16),
                     params["w2"].T.astype(jnp.bfloat16),
                     preferred_element_type=jnp.float32) + params["b2"]
    else:
        h2 = h1 @ params["w2"].T + params["b2"]
    h2 = jnp.maximum(h2, 0.0)
    return h2 @ params["w3"].T + params["b3"]


if __name__ == "__main__":
    key = jax.random.PRNGKey(0)
    kx, kp = jax.random.split(key)
    params = init_params(kp)

    ok = True
    for B in (8, 300):   # 300 exercises the multi-tile (grid=2) + padding path
        x = jax.random.normal(jax.random.fold_in(kx, B), (B, 2), jnp.float32)
        out = jax.block_until_ready(dynamics_nlp_forward(x, params))
        assert out.shape == (B, 1)

        # Tight check vs a reference that mirrors the kernel's bf16 layer 2.
        ref_match = _reference(x, params, bf16_layer2=True)
        ok &= bool(jnp.allclose(out, ref_match, atol=1e-3, rtol=1e-3))

        # Loose check vs the pure-f32 reference (bf16 MXU operands -> ~1e-3
        # relative error is the deliberate accuracy/perf tradeoff).
        ref_f32 = _reference(x, params, bf16_layer2=False)
        ok &= bool(jnp.allclose(out, ref_f32, atol=5e-2, rtol=5e-2))

    assert ok
    print("KERNEL_OK")
</pallas_src>

<mosaic_0001>
module attributes {stable_mosaic.version = 11 : i64} {
  func.func @_mlp_kernel(%arg0: i32, %arg1: memref<2x128xf32, #tpu.memory_space<vmem>>, %arg2: memref<128x128xbf16, #tpu.memory_space<vmem>>, %arg3: memref<128x8xf32, #tpu.memory_space<vmem>>, %arg4: memref<1x128xf32, #tpu.memory_space<vmem>>) attributes {dimension_semantics = [#tpu.dimension_semantics<parallel>], iteration_bounds = array<i64: 1>, scalar_prefetch = 0 : i64, scratch_operands = 0 : i64, tpu.core_type = #tpu.core_type<tc>, window_params = [{transform_indices = @transform_0, window_bounds = array<i64: 2, 128>}, {pipeline_mode = #tpu.pipeline_mode<synchronous>, transform_indices = @transform_1, window_bounds = array<i64: 128, 128>}, {pipeline_mode = #tpu.pipeline_mode<synchronous>, transform_indices = @transform_2, window_bounds = array<i64: 128, 8>}, {transform_indices = @transform_3, window_bounds = array<i64: 1, 128>}]} {
    %c0 = arith.constant 0 : index
    %c0_0 = arith.constant 0 : index
    %0 = vector.load %arg1[%c0, %c0_0] : memref<2x128xf32, #tpu.memory_space<vmem>>, vector<2x128xf32>
    %c0_1 = arith.constant 0 : index
    %c0_2 = arith.constant 0 : index
    %1 = vector.load %arg3[%c0_1, %c0_2] : memref<128x8xf32, #tpu.memory_space<vmem>>, vector<128x8xf32>
    %2 = vector.extract_strided_slice %1 {offsets = [0, 0], sizes = [128, 1], strides = [1, 1]} : vector<128x8xf32> to vector<128x1xf32>
    %3 = vector.extract_strided_slice %1 {offsets = [0, 1], sizes = [128, 1], strides = [1, 1]} : vector<128x8xf32> to vector<128x1xf32>
    %4 = vector.extract_strided_slice %1 {offsets = [0, 2], sizes = [128, 1], strides = [1, 1]} : vector<128x8xf32> to vector<128x1xf32>
    %5 = vector.extract_strided_slice %1 {offsets = [0, 3], sizes = [128, 1], strides = [1, 1]} : vector<128x8xf32> to vector<128x1xf32>
    %6 = vector.extract_strided_slice %1 {offsets = [0, 4], sizes = [128, 1], strides = [1, 1]} : vector<128x8xf32> to vector<128x1xf32>
    %7 = vector.extract_strided_slice %1 {offsets = [0, 5], sizes = [1, 1], strides = [1, 1]} : vector<128x8xf32> to vector<1x1xf32>
    %8 = vector.extract_strided_slice %0 {offsets = [0, 0], sizes = [1, 128], strides = [1, 1]} : vector<2x128xf32> to vector<1x128xf32>
    %9 = vector.broadcast %2 : vector<128x1xf32> to vector<128x128xf32>
    %10 = vector.broadcast %8 : vector<1x128xf32> to vector<128x128xf32>
    %11 = arith.mulf %9, %10 : vector<128x128xf32>
    %12 = vector.extract_strided_slice %0 {offsets = [1, 0], sizes = [1, 128], strides = [1, 1]} : vector<2x128xf32> to vector<1x128xf32>
    %13 = vector.broadcast %3 : vector<128x1xf32> to vector<128x128xf32>
    %14 = vector.broadcast %12 : vector<1x128xf32> to vector<128x128xf32>
    %15 = arith.mulf %13, %14 : vector<128x128xf32>
    %16 = arith.addf %11, %15 : vector<128x128xf32>
    %17 = vector.broadcast %4 : vector<128x1xf32> to vector<128x128xf32>
    %18 = arith.addf %16, %17 : vector<128x128xf32>
    %cst = arith.constant 0.000000e+00 : f32
    %19 = vector.broadcast %cst : f32 to vector<128x128xf32>
    %20 = arith.maximumf %18, %19 : vector<128x128xf32>
    %c0_3 = arith.constant 0 : index
    %c0_4 = arith.constant 0 : index
    %21 = vector.load %arg2[%c0_3, %c0_4] : memref<128x128xbf16, #tpu.memory_space<vmem>>, vector<128x128xbf16>
    %22 = arith.truncf %20 : vector<128x128xf32> to vector<128x128xbf16>
    %cst_5 = arith.constant dense<0.000000e+00> : vector<128x128xf32>
    %23 = tpu.matmul %21, %22, %cst_5 {dimension_numbers = #tpu.dot_dimension_numbers<[1], [0], [0], [1], [0, 0, 1, 1], [], []>} : vector<128x128xbf16>, vector<128x128xbf16>, vector<128x128xf32> -> vector<128x128xf32>
    %24 = vector.broadcast %5 : vector<128x1xf32> to vector<128x128xf32>
    %25 = arith.addf %23, %24 : vector<128x128xf32>
    %cst_6 = arith.constant 0.000000e+00 : f32
    %26 = vector.broadcast %cst_6 : f32 to vector<128x128xf32>
    %27 = arith.maximumf %25, %26 : vector<128x128xf32>
    %28 = vector.broadcast %6 : vector<128x1xf32> to vector<128x128xf32>
    %29 = arith.mulf %28, %27 : vector<128x128xf32>
    %cst_7 = arith.constant dense<0.000000e+00> : vector<128xf32>
    %30 = vector.multi_reduction <add>, %29, %cst_7 [0] : vector<128x128xf32> to vector<128xf32>
    %31 = vector.shape_cast %30 : vector<128xf32> to vector<1x128xf32>
    %32 = vector.broadcast %7 : vector<1x1xf32> to vector<1x128xf32>
    %33 = arith.addf %31, %32 : vector<1x128xf32>
    %c0_8 = arith.constant 0 : index
    %c0_9 = arith.constant 0 : index
    %34 = vector.load %arg4[%c0_8, %c0_9] : memref<1x128xf32, #tpu.memory_space<vmem>>, vector<1x128xf32>
    tpu.vector_store %arg4[%c0_8, %c0_9], %33 {strides = array<i32>} : memref<1x128xf32, #tpu.memory_space<vmem>>, vector<1x128xf32>,
    return
  }
  func.func @transform_0(%arg0: i32) -> (i32, i32) {
    %c0_i32 = arith.constant 0 : i32
    %c0_i32_0 = arith.constant 0 : i32
    return %c0_i32, %arg0 : i32, i32
  }
  func.func @transform_1(%arg0: i32) -> (i32, i32) {
    %c0_i32 = arith.constant 0 : i32
    %c0_i32_0 = arith.constant 0 : i32
    %c0_i32_1 = arith.constant 0 : i32
    return %c0_i32, %c0_i32_0 : i32, i32
  }
  func.func @transform_2(%arg0: i32) -> (i32, i32) {
    %c0_i32 = arith.constant 0 : i32
    %c0_i32_0 = arith.constant 0 : i32
    %c0_i32_1 = arith.constant 0 : i32
    return %c0_i32, %c0_i32_0 : i32, i32
  }
  func.func @transform_3(%arg0: i32) -> (i32, i32) {
    %c0_i32 = arith.constant 0 : i32
    %c0_i32_0 = arith.constant 0 : i32
    return %c0_i32, %arg0 : i32, i32
  }
}

</mosaic_0001>

<llo_original>
// kernel: dynamics_nlp_forward.1
$region0: #{dynamics_nlp_forward.1}
  #allocation0 [shape = 'u32[]', space=smem, size = 0x4, offset = 0x4, fixed_abs, tag = 'smem constant byte address 0x4 - core index']
  #allocation1 [shape = 'u32[144,128]{1,0:T(1,128)}', space=vmem, size = 0x12000, scoped, tag = 'internal scratch']
  %s0 = inlined_call_operand.vmem [shape: f32[2,128], index: 0, kind: input, shape index: {}]
  %s1 = inlined_call_operand.vmem [shape: bf16[128,128], index: 1, kind: input, shape index: {}]
  %s2 = inlined_call_operand.vmem [shape: f32[128,8], index: 2, kind: input, shape index: {}]
  %s3 = inlined_call_operand.vmem [shape: f32[1,128], index: 3, kind: output, shape index: {}]
  %s4 = sld [smem:[#allocation0]]
  $region22: #{dynamics_nlp_forward.1} parent=0
    _
  %s6 = ssub.s32 1, %s4
  %s7 = scalar_select 0, %s6, %s4
  // Predicated region
  $region2: #{dynamics_nlp_forward.1} parent=0 // pred_check
    _
  $region3: #{dynamics_nlp_forward.1} parent=0 // pred_check_branch
    %9 = sbr.rel (0) target = $region5
  $region4: #{dynamics_nlp_forward.1} parent=0 // pred_region
    _
  $region5: #{dynamics_nlp_forward.1} parent=0 // pred_fallthru
    _
  // Predicated region
  $region6: #{dynamics_nlp_forward.1} parent=0 // pred_check
    _
  $region7: #{dynamics_nlp_forward.1} parent=0 // pred_check_branch
    %11 = sbr.rel (0) target = $region9
  $region8: #{dynamics_nlp_forward.1} parent=0 // pred_region
    _
  $region9: #{dynamics_nlp_forward.1} parent=0 // pred_fallthru
    _
  // Predicated region
  $region10: #{dynamics_nlp_forward.1} parent=0 // pred_check
    _
  $region11: #{dynamics_nlp_forward.1} parent=0 // pred_check_branch
    %13 = sbr.rel (0) target = $region13
  $region12: #{dynamics_nlp_forward.1} parent=0 // pred_region
    _
  $region13: #{dynamics_nlp_forward.1} parent=0 // pred_fallthru
    _
  %v15 = vld [vmem:[%s0] sm:$0x3]
  %v16 = vld [vmem:[%s2] sm:$0xff]
  %v17 = vld [vmem:[%s2 + $0x8] sm:$0xff]
  %v18 = vld [vmem:[%s2 + $0x10] sm:$0xff]
  %v19 = vld [vmem:[%s2 + $0x18] sm:$0xff]
  %v20 = vld [vmem:[%s2 + $0x20] sm:$0xff]
  %v21 = vld [vmem:[%s2 + $0x28] sm:$0xff]
  %v22 = vld [vmem:[%s2 + $0x30] sm:$0xff]
  %v23 = vld [vmem:[%s2 + $0x38] sm:$0xff]
  %v24 = vld [vmem:[%s2 + $0x40] sm:$0xff]
  %v25 = vld [vmem:[%s2 + $0x48] sm:$0xff]
  %v26 = vld [vmem:[%s2 + $0x50] sm:$0xff]
  %v27 = vld [vmem:[%s2 + $0x58] sm:$0xff]
  %v28 = vld [vmem:[%s2 + $0x60] sm:$0xff]
  %v29 = vld [vmem:[%s2 + $0x68] sm:$0xff]
  %v30 = vld [vmem:[%s2 + $0x70] sm:$0xff]
  %v31 = vld [vmem:[%s2 + $0x78] sm:$0xff]
  %33 = vset.pattern.permute.xlu0 0
  %34 = vperm.xlu0 %33, %v16
  %v35 = vpop.permute.xlu0 %34
  %38 = vset.pattern.permute.xlu0 0
  %39 = vperm.xlu0 %38, %v17
  %v40 = vpop.permute.xlu0 %39
  %43 = vset.pattern.permute.xlu0 0
  %44 = vperm.xlu0 %43, %v18
  %v45 = vpop.permute.xlu0 %44
  %48 = vset.pattern.permute.xlu0 0
  %49 = vperm.xlu0 %48, %v19
  %v50 = vpop.permute.xlu0 %49
  %53 = vset.pattern.permute.xlu0 0
  %54 = vperm.xlu0 %53, %v20
  %v55 = vpop.permute.xlu0 %54
  %58 = vset.pattern.permute.xlu0 0
  %59 = vperm.xlu0 %58, %v21
  %v60 = vpop.permute.xlu0 %59
  %63 = vset.pattern.permute.xlu0 0
  %64 = vperm.xlu0 %63, %v22
  %v65 = vpop.permute.xlu0 %64
  %68 = vset.pattern.permute.xlu0 0
  %69 = vperm.xlu0 %68, %v23
  %v70 = vpop.permute.xlu0 %69
  %73 = vset.pattern.permute.xlu0 0
  %74 = vperm.xlu0 %73, %v24
  %v75 = vpop.permute.xlu0 %74
  %78 = vset.pattern.permute.xlu0 0
  %79 = vperm.xlu0 %78, %v25
  %v80 = vpop.permute.xlu0 %79
  %83 = vset.pattern.permute.xlu0 0
  %84 = vperm.xlu0 %83, %v26
  %v85 = vpop.permute.xlu0 %84
  %88 = vset.pattern.permute.xlu0 0
  %89 = vperm.xlu0 %88, %v27
  %v90 = vpop.permute.xlu0 %89
  %93 = vset.pattern.permute.xlu0 0
  %94 = vperm.xlu0 %93, %v28
  %v95 = vpop.permute.xlu0 %94
  %98 = vset.pattern.permute.xlu0 0
  %99 = vperm.xlu0 %98, %v29
  %v100 = vpop.permute.xlu0 %99
  %103 = vset.pattern.permute.xlu0 0
  %104 = vperm.xlu0 %103, %v30
  %v105 = vpop.permute.xlu0 %104
  %108 = vset.pattern.permute.xlu0 0
  %109 = vperm.xlu0 %108, %v31
  %v110 = vpop.permute.xlu0 %109
  %v112 = vlaneseq
  %v113 = vshrl.u32 %v112, 7
  %v114 = vsub.s32 0, %v113
  %v115 = vrot.slane %v15, %v114
  %v116 = vmul.f32 %v35, %v115
  %v117 = vmul.f32 %v40, %v115
  %v118 = vmul.f32 %v45, %v115
  %v119 = vmul.f32 %v50, %v115
  %v120 = vmul.f32 %v55, %v115
  %v121 = vmul.f32 %v60, %v115
  %v122 = vmul.f32 %v65, %v115
  %v123 = vmul.f32 %v70, %v115
  %v124 = vmul.f32 %v75, %v115
  %v125 = vmul.f32 %v80, %v115
  %v126 = vmul.f32 %v85, %v115
  %v127 = vmul.f32 %v90, %v115
  %v128 = vmul.f32 %v95, %v115
  %v129 = vmul.f32 %v100, %v115
  %v130 = vmul.f32 %v105, %v115
  %v131 = vmul.f32 %v110, %v115
  %132 = vset.pattern.permute.xlu0 1
  %133 = vperm.xlu0 %132, %v16
  %v134 = vpop.permute.xlu0 %133
  %136 = vset.pattern.permute.xlu0 1
  %137 = vperm.xlu0 %136, %v17
  %v138 = vpop.permute.xlu0 %137
  %140 = vset.pattern.permute.xlu0 1
  %141 = vperm.xlu0 %140, %v18
  %v142 = vpop.permute.xlu0 %141
  %144 = vset.pattern.permute.xlu0 1
  %145 = vperm.xlu0 %144, %v19
  %v146 = vpop.permute.xlu0 %145
  %148 = vset.pattern.permute.xlu0 1
  %149 = vperm.xlu0 %148, %v20
  %v150 = vpop.permute.xlu0 %149
  %152 = vset.pattern.permute.xlu0 1
  %153 = vperm.xlu0 %152, %v21
  %v154 = vpop.permute.xlu0 %153
  %156 = vset.pattern.permute.xlu0 1
  %157 = vperm.xlu0 %156, %v22
  %v158 = vpop.permute.xlu0 %157
  %160 = vset.pattern.permute.xlu0 1
  %161 = vperm.xlu0 %160, %v23
  %v162 = vpop.permute.xlu0 %161
  %164 = vset.pattern.permute.xlu0 1
  %165 = vperm.xlu0 %164, %v24
  %v166 = vpop.permute.xlu0 %165
  %168 = vset.pattern.permute.xlu0 1
  %169 = vperm.xlu0 %168, %v25
  %v170 = vpop.permute.xlu0 %169
  %172 = vset.pattern.permute.xlu0 1
  %173 = vperm.xlu0 %172, %v26
  %v174 = vpop.permute.xlu0 %173
  %176 = vset.pattern.permute.xlu0 1
  %177 = vperm.xlu0 %176, %v27
  %v178 = vpop.permute.xlu0 %177
  %180 = vset.pattern.permute.xlu0 1
  %181 = vperm.xlu0 %180, %v28
  %v182 = vpop.permute.xlu0 %181
  %184 = vset.pattern.permute.xlu0 1
  %185 = vperm.xlu0 %184, %v29
  %v186 = vpop.permute.xlu0 %185
  %188 = vset.pattern.permute.xlu0 1
  %189 = vperm.xlu0 %188, %v30
  %v190 = vpop.permute.xlu0 %189
  %192 = vset.pattern.permute.xlu0 1
  %193 = vperm.xlu0 %192, %v31
  %v194 = vpop.permute.xlu0 %193
  %v196 = vlaneseq
  %v197 = vshrl.u32 %v196, 7
  %v198 = vsub.s32 1, %v197
  %v199 = vrot.slane %v15, %v198
  %v200 = vmul.f32 %v134, %v199
  %v201 = vmul.f32 %v138, %v199
  %v202 = vmul.f32 %v142, %v199
  %v203 = vmul.f32 %v146, %v199
  %v204 = vmul.f32 %v150, %v199
  %v205 = vmul.f32 %v154, %v199
  %v206 = vmul.f32 %v158, %v199
  %v207 = vmul.f32 %v162, %v199
  %v208 = vmul.f32 %v166, %v199
  %v209 = vmul.f32 %v170, %v199
  %v210 = vmul.f32 %v174, %v199
  %v211 = vmul.f32 %v178, %v199
  %v212 = vmul.f32 %v182, %v199
  %v213 = vmul.f32 %v186, %v199
  %v214 = vmul.f32 %v190, %v199
  %v215 = vmul.f32 %v194, %v199
  %v216 = vadd.f32 %v116, %v200
  %v217 = vadd.f32 %v117, %v201
  %v218 = vadd.f32 %v118, %v202
  %v219 = vadd.f32 %v119, %v203
  %v220 = vadd.f32 %v120, %v204
  %v221 = vadd.f32 %v121, %v205
  %v222 = vadd.f32 %v122, %v206
  %v223 = vadd.f32 %v123, %v207
  %v224 = vadd.f32 %v124, %v208
  %v225 = vadd.f32 %v125, %v209
  %v226 = vadd.f32 %v126, %v210
  %v227 = vadd.f32 %v127, %v211
  %v228 = vadd.f32 %v128, %v212
  %v229 = vadd.f32 %v129, %v213
  %v230 = vadd.f32 %v130, %v214
  %v231 = vadd.f32 %v131, %v215
  %232 = vset.pattern.permute.xlu0 2
  %233 = vperm.xlu0 %232, %v16
  %v234 = vpop.permute.xlu0 %233
  %236 = vset.pattern.permute.xlu0 2
  %237 = vperm.xlu0 %236, %v17
  %v238 = vpop.permute.xlu0 %237
  %240 = vset.pattern.permute.xlu0 2
  %241 = vperm.xlu0 %240, %v18
  %v242 = vpop.permute.xlu0 %241
  %244 = vset.pattern.permute.xlu0 2
  %245 = vperm.xlu0 %244, %v19
  %v246 = vpop.permute.xlu0 %245
  %248 = vset.pattern.permute.xlu0 2
  %249 = vperm.xlu0 %248, %v20
  %v250 = vpop.permute.xlu0 %249
  %252 = vset.pattern.permute.xlu0 2
  %253 = vperm.xlu0 %252, %v21
  %v254 = vpop.permute.xlu0 %253
  %256 = vset.pattern.permute.xlu0 2
  %257 = vperm.xlu0 %256, %v22
  %v258 = vpop.permute.xlu0 %257
  %260 = vset.pattern.permute.xlu0 2
  %261 = vperm.xlu0 %260, %v23
  %v262 = vpop.permute.xlu0 %261
  %264 = vset.pattern.permute.xlu0 2
  %265 = vperm.xlu0 %264, %v24
  %v266 = vpop.permute.xlu0 %265
  %268 = vset.pattern.permute.xlu0 2
  %269 = vperm.xlu0 %268, %v25
  %v270 = vpop.permute.xlu0 %269
  %272 = vset.pattern.permute.xlu0 2
  %273 = vperm.xlu0 %272, %v26
  %v274 = vpop.permute.xlu0 %273
  %276 = vset.pattern.permute.xlu0 2
  %277 = vperm.xlu0 %276, %v27
  %v278 = vpop.permute.xlu0 %277
  %280 = vset.pattern.permute.xlu0 2
  %281 = vperm.xlu0 %280, %v28
  %v282 = vpop.permute.xlu0 %281
  %284 = vset.pattern.permute.xlu0 2
  %285 = vperm.xlu0 %284, %v29
  %v286 = vpop.permute.xlu0 %285
  %288 = vset.pattern.permute.xlu0 2
  %289 = vperm.xlu0 %288, %v30
  %v290 = vpop.permute.xlu0 %289
  %292 = vset.pattern.permute.xlu0 2
  %293 = vperm.xlu0 %292, %v31
  %v294 = vpop.permute.xlu0 %293
  %v296 = vadd.f32 %v216, %v234
  %v297 = vadd.f32 %v217, %v238
  %v298 = vadd.f32 %v218, %v242
  %v299 = vadd.f32 %v219, %v246
  %v300 = vadd.f32 %v220, %v250
  %v301 = vadd.f32 %v221, %v254
  %v302 = vadd.f32 %v222, %v258
  %v303 = vadd.f32 %v223, %v262
  %v304 = vadd.f32 %v224, %v266
  %v305 = vadd.f32 %v225, %v270
  %v306 = vadd.f32 %v226, %v274
  %v307 = vadd.f32 %v227, %v278
  %v308 = vadd.f32 %v228, %v282
  %v309 = vadd.f32 %v229, %v286
  %v310 = vadd.f32 %v230, %v290
  %v311 = vadd.f32 %v231, %v294
  %v312 = vmax.f32 %v296, 0.0
  %v313 = vmax.f32 %v297, 0.0
  %v314 = vmax.f32 %v298, 0.0
  %v315 = vmax.f32 %v299, 0.0
  %v316 = vmax.f32 %v300, 0.0
  %v317 = vmax.f32 %v301, 0.0
  %v318 = vmax.f32 %v302, 0.0
  %v319 = vmax.f32 %v303, 0.0
  %v320 = vmax.f32 %v304, 0.0
  %v321 = vmax.f32 %v305, 0.0
  %v322 = vmax.f32 %v306, 0.0
  %v323 = vmax.f32 %v307, 0.0
  %v324 = vmax.f32 %v308, 0.0
  %v325 = vmax.f32 %v309, 0.0
  %v326 = vmax.f32 %v310, 0.0
  %v327 = vmax.f32 %v311, 0.0
  %v328 = vld [vmem:[%s1] sm:$0xf]
  %v329 = vld [vmem:[%s1 + $0x4] sm:$0xf]
  %v330 = vld [vmem:[%s1 + $0x8] sm:$0xf]
  %v331 = vld [vmem:[%s1 + $0xc] sm:$0xf]
  %v332 = vld [vmem:[%s1 + $0x10] sm:$0xf]
  %v333 = vld [vmem:[%s1 + $0x14] sm:$0xf]
  %v334 = vld [vmem:[%s1 + $0x18] sm:$0xf]
  %v335 = vld [vmem:[%s1 + $0x1c] sm:$0xf]
  %v336 = vld [vmem:[%s1 + $0x20] sm:$0xf]
  %v337 = vld [vmem:[%s1 + $0x24] sm:$0xf]
  %v338 = vld [vmem:[%s1 + $0x28] sm:$0xf]
  %v339 = vld [vmem:[%s1 + $0x2c] sm:$0xf]
  %v340 = vld [vmem:[%s1 + $0x30] sm:$0xf]
  %v341 = vld [vmem:[%s1 + $0x34] sm:$0xf]
  %v342 = vld [vmem:[%s1 + $0x38] sm:$0xf]
  %v343 = vld [vmem:[%s1 + $0x3c] sm:$0xf]
  %v344 = vpack.c.bf16 %v313, %v312
  %v345 = vpack.c.bf16 %v315, %v314
  %v346 = vpack.c.bf16 %v317, %v316
  %v347 = vpack.c.bf16 %v319, %v318
  %v348 = vpack.c.bf16 %v321, %v320
  %v349 = vpack.c.bf16 %v323, %v322
  %v350 = vpack.c.bf16 %v325, %v324
  %v351 = vpack.c.bf16 %v327, %v326
  %352 = vset.pattern.permute.xlu0 3
  %353 = vperm.xlu0 %352, %v16
  %v354 = vpop.permute.xlu0 %353
  %356 = vset.pattern.permute.xlu0 3
  %357 = vperm.xlu0 %356, %v17
  %v358 = vpop.permute.xlu0 %357
  %360 = vset.pattern.permute.xlu0 3
  %361 = vperm.xlu0 %360, %v18
  %v362 = vpop.permute.xlu0 %361
  %364 = vset.pattern.permute.xlu0 3
  %365 = vperm.xlu0 %364, %v19
  %v366 = vpop.permute.xlu0 %365
  %368 = vset.pattern.permute.xlu0 3
  %369 = vperm.xlu0 %368, %v20
  %v370 = vpop.permute.xlu0 %369
  %372 = vset.pattern.permute.xlu0 3
  %373 = vperm.xlu0 %372, %v21
  %v374 = vpop.permute.xlu0 %373
  %376 = vset.pattern.permute.xlu0 3
  %377 = vperm.xlu0 %376, %v22
  %v378 = vpop.permute.xlu0 %377
  %380 = vset.pattern.permute.xlu0 3
  %381 = vperm.xlu0 %380, %v23
  %v382 = vpop.permute.xlu0 %381
  %384 = vset.pattern.permute.xlu0 3
  %385 = vperm.xlu0 %384, %v24
  %v386 = vpop.permute.xlu0 %385
  %388 = vset.pattern.permute.xlu0 3
  %389 = vperm.xlu0 %388, %v25
  %v390 = vpop.permute.xlu0 %389
  %392 = vset.pattern.permute.xlu0 3
  %393 = vperm.xlu0 %392, %v26
  %v394 = vpop.permute.xlu0 %393
  %396 = vset.pattern.permute.xlu0 3
  %397 = vperm.xlu0 %396, %v27
  %v398 = vpop.permute.xlu0 %397
  %400 = vset.pattern.permute.xlu0 3
  %401 = vperm.xlu0 %400, %v28
  %v402 = vpop.permute.xlu0 %401
  %404 = vset.pattern.permute.xlu0 3
  %405 = vperm.xlu0 %404, %v29
  %v406 = vpop.permute.xlu0 %405
  %408 = vset.pattern.permute.xlu0 3
  %409 = vperm.xlu0 %408, %v30
  %v410 = vpop.permute.xlu0 %409
  %412 = vset.pattern.permute.xlu0 3
  %413 = vperm.xlu0 %412, %v31
  %v414 = vpop.permute.xlu0 %413
  %v432 = vunpack.c.l.b16 %v328
  %v433 = vunpack.c.l.b16 %v329
  %v434 = vunpack.c.l.b16 %v330
  %v435 = vunpack.c.l.b16 %v331
  %v436 = vunpack.c.l.b16 %v332
  %v437 = vunpack.c.l.b16 %v333
  %v438 = vunpack.c.l.b16 %v334
  %v439 = vunpack.c.l.b16 %v335
  %v440 = vunpack.c.l.b16 %v336
  %v441 = vunpack.c.l.b16 %v337
  %v442 = vunpack.c.l.b16 %v338
  %v443 = vunpack.c.l.b16 %v339
  %v444 = vunpack.c.l.b16 %v340
  %v445 = vunpack.c.l.b16 %v341
  %v446 = vunpack.c.l.b16 %v342
  %v447 = vunpack.c.l.b16 %v343
  %v448 = vpack.c.b16 %v433, %v432
  %v449 = vpack.c.b16 %v435, %v434
  %v450 = vpack.c.b16 %v437, %v436
  %v451 = vpack.c.b16 %v439, %v438
  %v452 = vpack.c.b16 %v441, %v440
  %v453 = vpack.c.b16 %v443, %v442
  %v454 = vpack.c.b16 %v445, %v444
  %v455 = vpack.c.b16 %v447, %v446
  %464 = vmatprep.subr.bf16.mxu0 0
  %465 = vmatpush1.bf16.msra.mxu0 %v344
  %466 = vmatprep.subr.bf16.mxu0 0
  %467 = vmatpush1.bf16.msra.mxu0 %v345
  %468 = vmatprep.subr.bf16.mxu0 0
  %469 = vmatpush1.bf16.msra.mxu0 %v346
  %470 = vmatprep.subr.bf16.mxu0 0
  %471 = vmatpush1.bf16.msra.mxu0 %v347
  %472 = vmatprep.subr.bf16.mxu0 0
  %473 = vmatpush1.bf16.msra.mxu0 %v348
  %474 = vmatprep.subr.bf16.mxu0 0
  %475 = vmatpush1.bf16.msra.mxu0 %v349
  %476 = vmatprep.subr.bf16.mxu0 0
  %477 = vmatpush1.bf16.msra.mxu0 %v350
  %478 = vmatprep.subr.bf16.mxu0 0
  %479 = vmatpush1.bf16.msra.mxu0 %v351
  %480 = vmatprep.subr.bf16.mxu0 0
  %481 = vmatpush1.bf16.msra.mxu0 0
  %482 = vmatprep.subr.bf16.mxu0 0
  %483 = vmatpush1.bf16.msra.mxu0 0
  %484 = vmatprep.subr.bf16.mxu0 0
  %485 = vmatpush1.bf16.msra.mxu0 0
  %486 = vmatprep.subr.bf16.mxu0 0
  %487 = vmatpush1.bf16.msra.mxu0 0
  %488 = vmatprep.subr.bf16.mxu0 0
  %489 = vmatpush1.bf16.msra.mxu0 0
  %490 = vmatprep.subr.bf16.mxu0 0
  %491 = vmatpush1.bf16.msra.mxu0 0
  %492 = vmatprep.subr.bf16.mxu0 0
  %493 = vmatpush1.bf16.msra.mxu0 0
  %494 = vmatprep.subr.bf16.mxu0 0
  %495 = vmatpush1.bf16.msra.mxu0 0
  %496 = vmatprep.mubr.bf16.mxu0 0
  %497 = vmatmul.mubr.bf16.gmra.mrb[0].mxu0 %v448
  %v498 = vpop.f32.mrb[0].mxu0
  %v499 = vadd.f32 %v354, %v498
  %v500 = vpop.f32.mrb[0].mxu0
  %v501 = vpop.f32.mrb[0].mxu0
  %v502 = vadd.f32 %v358, %v501
  %v503 = vpop.f32.mrb[0].mxu0
  %504 = vmatprep.mubr.bf16.mxu0 0
  %505 = vmatmul.mubr.bf16.gmra.mrb[0].mxu0 %v449
  %v506 = vpop.f32.mrb[0].mxu0
  %v507 = vadd.f32 %v362, %v506
  %v508 = vpop.f32.mrb[0].mxu0
  %v509 = vpop.f32.mrb[0].mxu0
  %v510 = vadd.f32 %v366, %v509
  %v511 = vpop.f32.mrb[0].mxu0
  %512 = vmatprep.mubr.bf16.mxu0 0
  %513 = vmatmul.mubr.bf16.gmra.mrb[0].mxu0 %v450
  %v514 = vpop.f32.mrb[0].mxu0
  %v515 = vadd.f32 %v370, %v514
  %v516 = vpop.f32.mrb[0].mxu0
  %v517 = vpop.f32.mrb[0].mxu0
  %v518 = vadd.f32 %v374, %v517
  %v519 = vpop.f32.mrb[0].mxu0
  %520 = vmatprep.mubr.bf16.mxu0 0
  %521 = vmatmul.mubr.bf16.gmra.mrb[0].mxu0 %v451
  %v522 = vpop.f32.mrb[0].mxu0
  %v523 = vadd.f32 %v378, %v522
  %v524 = vpop.f32.mrb[0].mxu0
  %v525 = vpop.f32.mrb[0].mxu0
  %v526 = vadd.f32 %v382, %v525
  %v527 = vpop.f32.mrb[0].mxu0
  %528 = vmatprep.mubr.bf16.mxu0 0
  %529 = vmatmul.mubr.bf16.gmra.mrb[0].mxu0 %v452
  %v530 = vpop.f32.mrb[0].mxu0
  %v531 = vadd.f32 %v386, %v530
  %v532 = vpop.f32.mrb[0].mxu0
  %v533 = vpop.f32.mrb[0].mxu0
  %v534 = vadd.f32 %v390, %v533
  %v535 = vpop.f32.mrb[0].mxu0
  %536 = vmatprep.mubr.bf16.mxu0 0
  %537 = vmatmul.mubr.bf16.gmra.mrb[0].mxu0 %v453
  %v538 = vpop.f32.mrb[0].mxu0
  %v539 = vadd.f32 %v394, %v538
  %v540 = vpop.f32.mrb[0].mxu0
  %v541 = vpop.f32.mrb[0].mxu0
  %v542 = vadd.f32 %v398, %v541
  %v543 = vpop.f32.mrb[0].mxu0
  %544 = vmatprep.mubr.bf16.mxu0 0
  %545 = vmatmul.mubr.bf16.gmra.mrb[0].mxu0 %v454
  %v546 = vpop.f32.mrb[0].mxu0
  %v547 = vadd.f32 %v402, %v546
  %v548 = vpop.f32.mrb[0].mxu0
  %v549 = vpop.f32.mrb[0].mxu0
  %v550 = vadd.f32 %v406, %v549
  %v551 = vpop.f32.mrb[0].mxu0
  %552 = vmatprep.mubr.bf16.mxu0 0
  %553 = vmatmul.mubr.bf16.gmra.mrb[0].mxu0 %v455
  %v554 = vpop.f32.mrb[0].mxu0
  %v555 = vadd.f32 %v410, %v554
  %v556 = vpop.f32.mrb[0].mxu0
  %v557 = vpop.f32.mrb[0].mxu0
  %v558 = vadd.f32 %v414, %v557
  %v559 = vpop.f32.mrb[0].mxu0
  %560 = vdwg.mxu0
  %v561 = vmax.f32 %v499, 0.0
  %v562 = vmax.f32 %v502, 0.0
  %v563 = vmax.f32 %v507, 0.0
  %v564 = vmax.f32 %v510, 0.0
  %v565 = vmax.f32 %v515, 0.0
  %v566 = vmax.f32 %v518, 0.0
  %v567 = vmax.f32 %v523, 0.0
  %v568 = vmax.f32 %v526, 0.0
  %v569 = vmax.f32 %v531, 0.0
  %v570 = vmax.f32 %v534, 0.0
  %v571 = vmax.f32 %v539, 0.0
  %v572 = vmax.f32 %v542, 0.0
  %v573 = vmax.f32 %v547, 0.0
  %v574 = vmax.f32 %v550, 0.0
  %v575 = vmax.f32 %v555, 0.0
  %v576 = vmax.f32 %v558, 0.0
  %577 = vset.pattern.permute.xlu0 4
  %578 = vperm.xlu0 %577, %v16
  %v579 = vpop.permute.xlu0 %578
  %581 = vset.pattern.permute.xlu0 4
  %582 = vperm.xlu0 %581, %v17
  %v583 = vpop.permute.xlu0 %582
  %585 = vset.pattern.permute.xlu0 4
  %586 = vperm.xlu0 %585, %v18
  %v587 = vpop.permute.xlu0 %586
  %589 = vset.pattern.permute.xlu0 4
  %590 = vperm.xlu0 %589, %v19
  %v591 = vpop.permute.xlu0 %590
  %593 = vset.pattern.permute.xlu0 4
  %594 = vperm.xlu0 %593, %v20
  %v595 = vpop.permute.xlu0 %594
  %597 = vset.pattern.permute.xlu0 4
  %598 = vperm.xlu0 %597, %v21
  %v599 = vpop.permute.xlu0 %598
  %601 = vset.pattern.permute.xlu0 4
  %602 = vperm.xlu0 %601, %v22
  %v603 = vpop.permute.xlu0 %602
  %605 = vset.pattern.permute.xlu0 4
  %606 = vperm.xlu0 %605, %v23
  %v607 = vpop.permute.xlu0 %606
  %609 = vset.pattern.permute.xlu0 4
  %610 = vperm.xlu0 %609, %v24
  %v611 = vpop.permute.xlu0 %610
  %613 = vset.pattern.permute.xlu0 4
  %614 = vperm.xlu0 %613, %v25
  %v615 = vpop.permute.xlu0 %614
  %617 = vset.pattern.permute.xlu0 4
  %618 = vperm.xlu0 %617, %v26
  %v619 = vpop.permute.xlu0 %618
  %621 = vset.pattern.permute.xlu0 4
  %622 = vperm.xlu0 %621, %v27
  %v623 = vpop.permute.xlu0 %622
  %625 = vset.pattern.permute.xlu0 4
  %626 = vperm.xlu0 %625, %v28
  %v627 = vpop.permute.xlu0 %626
  %629 = vset.pattern.permute.xlu0 4
  %630 = vperm.xlu0 %629, %v29
  %v631 = vpop.permute.xlu0 %630
  %633 = vset.pattern.permute.xlu0 4
  %634 = vperm.xlu0 %633, %v30
  %v635 = vpop.permute.xlu0 %634
  %637 = vset.pattern.permute.xlu0 4
  %638 = vperm.xlu0 %637, %v31
  %v639 = vpop.permute.xlu0 %638
  %v641 = vmul.f32 %v579, %v561
  %v642 = vmul.f32 %v583, %v562
  %v643 = vmul.f32 %v587, %v563
  %v644 = vmul.f32 %v591, %v564
  %v645 = vmul.f32 %v595, %v565
  %v646 = vmul.f32 %v599, %v566
  %v647 = vmul.f32 %v603, %v567
  %v648 = vmul.f32 %v607, %v568
  %v649 = vmul.f32 %v611, %v569
  %v650 = vmul.f32 %v615, %v570
  %v651 = vmul.f32 %v619, %v571
  %v652 = vmul.f32 %v623, %v572
  %v653 = vmul.f32 %v627, %v573
  %v654 = vmul.f32 %v631, %v574
  %v655 = vmul.f32 %v635, %v575
  %v656 = vmul.f32 %v639, %v576
  %v657 = vadd.f32 %v641, %v642
  %v658 = vadd.f32 %v657, %v643
  %v659 = vadd.f32 %v658, %v644
  %v660 = vadd.f32 %v659, %v645
  %v661 = vadd.f32 %v660, %v646
  %v662 = vadd.f32 %v661, %v647
  %v663 = vadd.f32 %v662, %v648
  %v664 = vadd.f32 %v663, %v649
  %v665 = vadd.f32 %v664, %v650
  %v666 = vadd.f32 %v665, %v651
  %v667 = vadd.f32 %v666, %v652
  %v668 = vadd.f32 %v667, %v653
  %v669 = vadd.f32 %v668, %v654
  %v670 = vadd.f32 %v669, %v655
  %v671 = vadd.f32 %v670, %v656
  %v672 = vrot.slane %v671, 4
  %v673 = vadd.f32 %v671, %v672
  %v674 = vrot.slane %v673, 2
  %v675 = vadd.f32 %v673, %v674
  %v676 = vrot.slane %v675, 1
  %v677 = vadd.f32 %v675, %v676
  %678 = vset.pattern.permute.xlu0 5
  %679 = vperm.xlu0 %678, %v16
  %v680 = vpop.permute.xlu0 %679
  %v682 = vadd.f32 %v677, %v680
  %683 = vst [vmem:[%s3] sm:$0x1] %v682
  // Predicated region
  $region14: #{dynamics_nlp_forward.1} parent=0 // pred_check
    _
  $region15: #{dynamics_nlp_forward.1} parent=0 // pred_check_branch
    %685 = sbr.rel (0) target = $region17
  $region16: #{dynamics_nlp_forward.1} parent=0 // pred_region
    _
  $region17: #{dynamics_nlp_forward.1} parent=0 // pred_fallthru
    _
  // Predicated region
  $region18: #{dynamics_nlp_forward.1} parent=0 // pred_check
    _
  $region19: #{dynamics_nlp_forward.1} parent=0 // pred_check_branch
    %687 = sbr.rel (0) target = $region21
  $region20: #{dynamics_nlp_forward.1} parent=0 // pred_region
    _
  $region21: #{dynamics_nlp_forward.1} parent=0 // pred_fallthru
    _

</llo_original>
